<compile_context>
chip_gen: v7x
topology: tpu7x:2x2x1
jax: 0.10.0
libtpu: 0.0.40
codegen_flags: <defaults>
</compile_context>

<pallas_src>
import jax
import jax.numpy as jnp
from jax.experimental import pallas as pl
from jax.experimental.pallas import tpu as pltpu


def _round_up(x, m):
    return (x + m - 1) // m * m


def _cdiv(a, b):
    return (a + b - 1) // b


# ---------------------------------------------------------------------------
# Kernels
# ---------------------------------------------------------------------------

def ffn_kernel_resident(x_ref, w1_ref, b1_ref, w2_ref, b2_ref, o_ref):
    """W1/W2 VMEM-resident: full hidden computed per row tile, no accumulator."""
    # x_ref:(TM,Dp) bf16  w1_ref:(Dp,Hp) bf16  b1_ref:(1,Hp) f32
    # w2_ref:(Hp,Dp) bf16 b2_ref:(1,Dp) f32    o_ref:(TM,Dp)
    h = jnp.dot(x_ref[...], w1_ref[...], preferred_element_type=jnp.float32)
    h = jnp.maximum(h + b1_ref[...], 0.0)
    # TODO(synk): dropout omitted (inference mode -> identity).
    y = jnp.dot(h.astype(w2_ref.dtype), w2_ref[...],
                preferred_element_type=jnp.float32)
    o_ref[...] = (y + b2_ref[...]).astype(o_ref.dtype)


def ffn_kernel_streaming(x_ref, w1_ref, b1_ref, w2_ref, b2_ref, o_ref, acc_ref):
    """Fallback for very large D*H: hidden dim streamed as a reduction axis."""
    hi = pl.program_id(1)

    @pl.when(hi == 0)
    def _():
        acc_ref[...] = jnp.zeros_like(acc_ref)

    h = jnp.dot(x_ref[...], w1_ref[...], preferred_element_type=jnp.float32)
    h = jnp.maximum(h + b1_ref[...], 0.0)
    # TODO(synk): dropout omitted (inference mode -> identity).
    acc_ref[...] += jnp.dot(h.astype(w2_ref.dtype), w2_ref[...],
                            preferred_element_type=jnp.float32)

    @pl.when(hi == pl.num_programs(1) - 1)
    def _():
        o_ref[...] = (acc_ref[...] + b2_ref[...]).astype(o_ref.dtype)


# ---------------------------------------------------------------------------
# Wrapper
# ---------------------------------------------------------------------------

def positionwise_feed_forward(
        xs, w1, b1, w2, b2, *,
        tm=512, th=512,
        compute_dtype=jnp.bfloat16,
        vmem_limit_bytes=48 * 1024 * 1024,      # safe on v7x (64 MiB/TC)
        resident_budget_bytes=40 * 1024 * 1024,
        force_streaming=False):
    """xs: (B, L, D); w1: (D, H); b1: (H,); w2: (H, D); b2: (D,)."""
    B, L, D = xs.shape
    H = w1.shape[1]
    M = B * L
    out_dtype = xs.dtype
    c_item = jnp.dtype(compute_dtype).itemsize
    o_item = jnp.dtype(out_dtype).itemsize
    # min sublane granularity for the second-minor dim: 8 (f32), 16 (bf16), 32 (8-bit)
    sublane = max(8, 32 // c_item)

    x2d = xs.reshape(M, D).astype(compute_dtype)
    w1c = w1.astype(compute_dtype)
    w2c = w2.astype(compute_dtype)
    b1f = b1.astype(jnp.float32)
    b2f = b2.astype(jnp.float32)

    Dp = _round_up(D, 128)
    Hp_full = _round_up(H, 128)

    # --- adaptive row-tile selection ---------------------------------------
    Msub = _round_up(M, sublane)
    tm = max(sublane, min(tm, Msub))
    # v7x has 2 TensorCores: keep >= 2 row tiles whenever possible so the
    # "parallel" m axis can shard across both (no-op for large M).
    if Msub >= 2 * sublane:
        tm = min(tm, _round_up(_cdiv(Msub, 2), sublane))
    # Rebalance tm across the tile count so the last tile wastes little.
    n_m = _cdiv(Msub, tm)
    tm = _round_up(_cdiv(Msub, n_m), sublane)
    Mp = n_m * tm

    # --- residency decision (weights double-buffered + tiles + f32 temps) ---
    resident_vmem = (
        2 * (Dp * Hp_full + Hp_full * Dp) * c_item      # W1 + W2 (x2 buffers)
        + 2 * tm * Dp * c_item                          # x tile
        + 2 * tm * Dp * o_item                          # out tile
        + tm * Hp_full * 4 + tm * Dp * 4                # f32 hidden / result
        + 2 * (Hp_full + Dp) * 4                        # biases
    )
    use_resident = (not force_streaming) and resident_vmem <= resident_budget_bytes

    if use_resident:
        Hp = Hp_full
    else:
        th = _round_up(min(th, Hp_full), 128)
        Hp = _round_up(H, th)

    # --- zero-pad to tile boundaries (exact: padded cols/rows contribute 0) --
    if (Mp, Dp) != (M, D):
        x2d = jnp.pad(x2d, ((0, Mp - M), (0, Dp - D)))
    if (Dp, Hp) != (D, H):
        w1c = jnp.pad(w1c, ((0, Dp - D), (0, Hp - H)))
        w2c = jnp.pad(w2c, ((0, Hp - H), (0, Dp - D)))
        b1f = jnp.pad(b1f, (0, Hp - H))
        b2f = jnp.pad(b2f, (0, Dp - D))
    b1_2d = b1f.reshape(1, Hp)
    b2_2d = b2f.reshape(1, Dp)

    flops = 4 * Mp * Dp * Hp  # two matmuls

    if use_resident:
        grid = (Mp // tm,)
        bytes_accessed = int(
            Mp * Dp * c_item                    # x read once
            + Mp * Dp * o_item                  # out written once
            + (Dp * Hp + Hp * Dp) * c_item      # weights read once (resident)
            + (Hp + Dp) * 4)                    # biases
        out2d = pl.pallas_call(
            ffn_kernel_resident,
            out_shape=jax.ShapeDtypeStruct((Mp, Dp), out_dtype),
            grid_spec=pltpu.PrefetchScalarGridSpec(
                num_scalar_prefetch=0,
                grid=grid,
                in_specs=[
                    pl.BlockSpec((tm, Dp), lambda m: (m, 0)),   # x rows
                    pl.BlockSpec((Dp, Hp), lambda m: (0, 0)),   # W1 (resident)
                    pl.BlockSpec((1, Hp), lambda m: (0, 0)),    # b1 (resident)
                    pl.BlockSpec((Hp, Dp), lambda m: (0, 0)),   # W2 (resident)
                    pl.BlockSpec((1, Dp), lambda m: (0, 0)),    # b2 (resident)
                ],
                out_specs=pl.BlockSpec((tm, Dp), lambda m: (m, 0)),
            ),
            compiler_params=pltpu.CompilerParams(
                dimension_semantics=("parallel",),
                vmem_limit_bytes=vmem_limit_bytes,
            ),
            cost_estimate=pl.CostEstimate(
                flops=flops, transcendentals=0, bytes_accessed=bytes_accessed),
        )(x2d, w1c, b1_2d, w2c, b2_2d)
    else:
        grid = (Mp // tm, Hp // th)
        bytes_accessed = int(
            Mp * Dp * c_item                    # x read once (block reused over h)
            + Mp * Dp * o_item                  # out written once
            + (Dp * Hp + Hp * Dp) * c_item * grid[0]   # weights re-streamed per row tile
            + (Hp + Dp) * 4)
        out2d = pl.pallas_call(
            ffn_kernel_streaming,
            out_shape=jax.ShapeDtypeStruct((Mp, Dp), out_dtype),
            grid_spec=pltpu.PrefetchScalarGridSpec(
                num_scalar_prefetch=0,
                grid=grid,
                in_specs=[
                    pl.BlockSpec((tm, Dp), lambda m, h: (m, 0)),   # x rows
                    pl.BlockSpec((Dp, th), lambda m, h: (0, h)),   # W1 col slice
                    pl.BlockSpec((1, th), lambda m, h: (0, h)),    # b1 slice
                    pl.BlockSpec((th, Dp), lambda m, h: (h, 0)),   # W2 row slice
                    pl.BlockSpec((1, Dp), lambda m, h: (0, 0)),    # b2
                ],
                out_specs=pl.BlockSpec((tm, Dp), lambda m, h: (m, 0)),
                scratch_shapes=[pltpu.VMEM((tm, Dp), jnp.float32)],
            ),
            compiler_params=pltpu.CompilerParams(
                dimension_semantics=("parallel", "arbitrary"),
                vmem_limit_bytes=vmem_limit_bytes,
            ),
            cost_estimate=pl.CostEstimate(
                flops=flops, transcendentals=0, bytes_accessed=bytes_accessed),
        )(x2d, w1c, b1_2d, w2c, b2_2d)

    return out2d[:M, :D].reshape(B, L, D)


def init_params(key, idim, hidden_units, dtype=jnp.float32):
    """Deterministic init mimicking torch.nn.Linear defaults (uniform +-1/sqrt(fan_in))."""
    k1, k2, k3, k4 = jax.random.split(key, 4)
    bound1 = 1.0 / (idim ** 0.5)
    bound2 = 1.0 / (hidden_units ** 0.5)
    # PyTorch Linear stores weight as (out, in); we store transposed (in, out)
    # so the kernel computes x @ W directly.
    w1 = jax.random.uniform(k1, (idim, hidden_units), dtype, -bound1, bound1)
    b1 = jax.random.uniform(k2, (hidden_units,), dtype, -bound1, bound1)
    w2 = jax.random.uniform(k3, (hidden_units, idim), dtype, -bound2, bound2)
    b2 = jax.random.uniform(k4, (idim,), dtype, -bound2, bound2)
    return w1, b1, w2, b2


if __name__ == "__main__":
    key = jax.random.PRNGKey(0)
    kx, kp = jax.random.split(key)

    # Small but tile-exercising shapes: D, H >= 128 so the real (8,128)/(16,128)
    # code paths run; M = 32 rows so the resident path takes 2 row tiles
    # (exercises the parallel m axis) and the streaming path takes a 2x2 grid
    # (exercises the accumulator init/finalize path).
    B, L, D, H = 2, 16, 128, 256   # batch, seq, idim, hidden_units
    xs = jax.random.normal(kx, (B, L, D), dtype=jnp.float32)
    w1, b1, w2, b2 = init_params(kp, D, H)

    # Reference in plain f32 JAX (bf16 MXU path -> loosened tolerance).
    ref = jnp.maximum(xs @ w1 + b1, 0.0) @ w2 + b2

    # Fast path: resident weights, 1-D grid.
    out = positionwise_feed_forward(xs, w1, b1, w2, b2)
    out = jax.block_until_ready(out)
    assert out.shape == (B, L, D)
    assert jnp.allclose(out, ref, atol=5e-2, rtol=5e-2), "resident path mismatch"

    # Fallback path: streamed hidden slices (used for very large D*H).
    out_s = positionwise_feed_forward(xs, w1, b1, w2, b2,
                                      th=128, force_streaming=True)
    out_s = jax.block_until_ready(out_s)
    assert jnp.allclose(out_s, ref, atol=5e-2, rtol=5e-2), "streaming path mismatch"

    print("KERNEL_OK")
</pallas_src>

<mosaic_0001>
module attributes {stable_mosaic.version = 11 : i64} {
  func.func @ffn_kernel_resident(%arg0: i32, %arg1: memref<16x128xbf16, #tpu.memory_space<vmem>>, %arg2: memref<128x256xbf16, #tpu.memory_space<vmem>>, %arg3: memref<1x256xf32, #tpu.memory_space<vmem>>, %arg4: memref<256x128xbf16, #tpu.memory_space<vmem>>, %arg5: memref<1x128xf32, #tpu.memory_space<vmem>>, %arg6: memref<16x128xf32, #tpu.memory_space<vmem>>) attributes {dimension_semantics = [#tpu.dimension_semantics<parallel>], iteration_bounds = array<i64: 2>, scalar_prefetch = 0 : i64, scratch_operands = 0 : i64, tpu.core_type = #tpu.core_type<tc>, window_params = [{transform_indices = @transform_0, window_bounds = array<i64: 16, 128>}, {pipeline_mode = #tpu.pipeline_mode<synchronous>, transform_indices = @transform_1, window_bounds = array<i64: 128, 256>}, {pipeline_mode = #tpu.pipeline_mode<synchronous>, transform_indices = @transform_2, window_bounds = array<i64: 1, 256>}, {pipeline_mode = #tpu.pipeline_mode<synchronous>, transform_indices = @transform_3, window_bounds = array<i64: 256, 128>}, {pipeline_mode = #tpu.pipeline_mode<synchronous>, transform_indices = @transform_4, window_bounds = array<i64: 1, 128>}, {transform_indices = @transform_5, window_bounds = array<i64: 16, 128>}]} {
    %c0 = arith.constant 0 : index
    %c0_0 = arith.constant 0 : index
    %0 = vector.load %arg1[%c0, %c0_0] : memref<16x128xbf16, #tpu.memory_space<vmem>>, vector<16x128xbf16>
    %c0_1 = arith.constant 0 : index
    %c0_2 = arith.constant 0 : index
    %1 = vector.load %arg2[%c0_1, %c0_2] : memref<128x256xbf16, #tpu.memory_space<vmem>>, vector<128x256xbf16>
    %cst = arith.constant dense<0.000000e+00> : vector<16x256xf32>
    %2 = tpu.matmul %0, %1, %cst {dimension_numbers = #tpu.dot_dimension_numbers<[1], [0], [0], [1], [0, 0, 1, 1], [], []>} : vector<16x128xbf16>, vector<128x256xbf16>, vector<16x256xf32> -> vector<16x256xf32>
    %c0_3 = arith.constant 0 : index
    %c0_4 = arith.constant 0 : index
    %3 = vector.load %arg3[%c0_3, %c0_4] : memref<1x256xf32, #tpu.memory_space<vmem>>, vector<1x256xf32>
    %4 = vector.broadcast %3 : vector<1x256xf32> to vector<16x256xf32>
    %5 = arith.addf %2, %4 : vector<16x256xf32>
    %cst_5 = arith.constant 0.000000e+00 : f32
    %6 = vector.broadcast %cst_5 : f32 to vector<16x256xf32>
    %7 = arith.maximumf %5, %6 : vector<16x256xf32>
    %8 = arith.truncf %7 : vector<16x256xf32> to vector<16x256xbf16>
    %c0_6 = arith.constant 0 : index
    %c0_7 = arith.constant 0 : index
    %9 = vector.load %arg4[%c0_6, %c0_7] : memref<256x128xbf16, #tpu.memory_space<vmem>>, vector<256x128xbf16>
    %cst_8 = arith.constant dense<0.000000e+00> : vector<16x128xf32>
    %10 = tpu.matmul %8, %9, %cst_8 {dimension_numbers = #tpu.dot_dimension_numbers<[1], [0], [0], [1], [0, 0, 1, 1], [], []>} : vector<16x256xbf16>, vector<256x128xbf16>, vector<16x128xf32> -> vector<16x128xf32>
    %c0_9 = arith.constant 0 : index
    %c0_10 = arith.constant 0 : index
    %11 = vector.load %arg5[%c0_9, %c0_10] : memref<1x128xf32, #tpu.memory_space<vmem>>, vector<1x128xf32>
    %12 = vector.broadcast %11 : vector<1x128xf32> to vector<16x128xf32>
    %13 = arith.addf %10, %12 : vector<16x128xf32>
    %c0_11 = arith.constant 0 : index
    %c0_12 = arith.constant 0 : index
    %14 = vector.load %arg6[%c0_11, %c0_12] : memref<16x128xf32, #tpu.memory_space<vmem>>, vector<16x128xf32>
    tpu.vector_store %arg6[%c0_11, %c0_12], %13 {strides = array<i32>} : memref<16x128xf32, #tpu.memory_space<vmem>>, vector<16x128xf32>,
    return
  }
  func.func @transform_0(%arg0: i32) -> (i32, i32) {
    %c0_i32 = arith.constant 0 : i32
    %c0_i32_0 = arith.constant 0 : i32
    return %arg0, %c0_i32 : i32, i32
  }
  func.func @transform_1(%arg0: i32) -> (i32, i32) {
    %c0_i32 = arith.constant 0 : i32
    %c0_i32_0 = arith.constant 0 : i32
    %c0_i32_1 = arith.constant 0 : i32
    return %c0_i32, %c0_i32_0 : i32, i32
  }
  func.func @transform_2(%arg0: i32) -> (i32, i32) {
    %c0_i32 = arith.constant 0 : i32
    %c0_i32_0 = arith.constant 0 : i32
    %c0_i32_1 = arith.constant 0 : i32
    return %c0_i32, %c0_i32_0 : i32, i32
  }
  func.func @transform_3(%arg0: i32) -> (i32, i32) {
    %c0_i32 = arith.constant 0 : i32
    %c0_i32_0 = arith.constant 0 : i32
    %c0_i32_1 = arith.constant 0 : i32
    return %c0_i32, %c0_i32_0 : i32, i32
  }
  func.func @transform_4(%arg0: i32) -> (i32, i32) {
    %c0_i32 = arith.constant 0 : i32
    %c0_i32_0 = arith.constant 0 : i32
    %c0_i32_1 = arith.constant 0 : i32
    return %c0_i32, %c0_i32_0 : i32, i32
  }
  func.func @transform_5(%arg0: i32) -> (i32, i32) {
    %c0_i32 = arith.constant 0 : i32
    %c0_i32_0 = arith.constant 0 : i32
    return %arg0, %c0_i32 : i32, i32
  }
}

</mosaic_0001>

<llo_original>
// kernel: tpu_custom_call.1
$region0: #{tpu_custom_call.1}
  #allocation0 [shape = 'u32[]', space=smem, size = 0x4, offset = 0x4, fixed_abs, tag = 'smem constant byte address 0x4 - core index']
  #allocation1 [shape = 'u32[144,128]{1,0:T(1,128)}', space=vmem, size = 0x12000, scoped, tag = 'internal scratch']
  %s0 = inlined_call_operand.hbm [shape: bf16[32,128], index: 0, kind: input, shape index: {}]
  %s1 = inlined_call_operand.hbm [shape: bf16[128,256], index: 1, kind: input, shape index: {}]
  %s2 = inlined_call_operand.vmem [shape: f32[1,256], index: 2, kind: input, shape index: {}]
  %s3 = inlined_call_operand.hbm [shape: bf16[256,128], index: 3, kind: input, shape index: {}]
  %s4 = inlined_call_operand.vmem [shape: f32[1,128], index: 4, kind: input, shape index: {}]
  %s5 = inlined_call_operand.hbm [shape: f32[32,128], index: 5, kind: output, shape index: {}]
  %s6 = sld [smem:[#allocation0]]
  $region65: #{tpu_custom_call.1} parent=0
    _
  %s8 = ssub.s32 1, %s6
  %s9 = scalar_select 0, %s8, %s6
  $region1: #{tpu_custom_call.1} parent=0
    #allocation2 [shape = 'u8[8192]{0}', space=vmem, size = 0x2000, scoped, tag = 'input window, operand 0']
    #allocation3 [shape = 's32[2]{0}', space=sflag, size = 0x8, scoped, tag = 'scoped memory for tpu_custom_call.1']
    #allocation4 [shape = 's32[2]{0}', space=sflag, size = 0x8, scoped, tag = 'scoped memory for tpu_custom_call.1']
    #allocation5 [shape = 'u8[65536]{0}', space=vmem, size = 0x10000, scoped, tag = 'input window, operand 1, single buffered']
    #allocation6 [shape = 's32[1]{0}', space=sflag, size = 0x4, scoped, tag = 'scoped memory for tpu_custom_call.1']
    #allocation7 [shape = 'u8[65536]{0}', space=vmem, size = 0x10000, scoped, tag = 'input window, operand 3, single buffered']
    #allocation8 [shape = 'u8[16384]{0}', space=vmem, size = 0x4000, scoped, tag = 'output window, operand 0']
    %10 = vsyncpa [#allocation3], 0
    %s11 = scalar_lea.sflag [#allocation3], 1
    %12 = vsyncpa %s11, 0
    %13 = vsyncpa [#allocation6], 0
    %14 = vsyncpa [#allocation4], 0
    %s15 = scalar_lea.sflag [#allocation4], 1
    %16 = vsyncpa %s15, 0
    loop: start=0, step=1, limit=4
    $region2: #{tpu_custom_call.1} parent=1 // loop_pre_header
      _
    $region3: #{tpu_custom_call.1} parent=1 // loop_header
      %s18 = sphi 0, %s22
      %p19 = scmp.ge.s32.totalorder %s18, 4
      %s28 = sphi 0, %s30
      %s31 = sphi 0, %s28
      %s32 = sphi 0, %s31
      %s48 = sphi 0, %s32
      %s52 = sphi 0, %s52
      %s54 = sphi 0, %s52
      %s55 = sphi 0, %s54
      %s69 = sphi 0, %s55
      %s73 = sphi 0, %s73
      %s75 = sphi 0, %s73
      %s76 = sphi 0, %s75
      %s90 = sphi 0, %s76
      %s94 = sphi 0, %s94
      %s96 = sphi 0, %s94
      %s97 = sphi 0, %s96
      %s111 = sphi 0, %s97
      %s115 = sphi 0, %s115
      %s117 = sphi 0, %s115
      %s118 = sphi 0, %s117
      %s132 = sphi 0, %s118
      %s138 = sphi 0, %s140
      %s141 = sphi 0, %s138
      %s142 = sphi 0, %s141
      %s158 = sphi 0, %s142
    $region4: #{tpu_custom_call.1} parent=1 // loop_header_branch
      %21 = sbr.rel (%p19) target = $region8
    $region5: #{tpu_custom_call.1} parent=1 // loop_body
      %s23 = ssub.s32 %s18, 1
      %s24 = ssub.s32 %s18, 2
      %s25 = sadd.s32 %s18, 1
      %s26 = ssub.s32 %s18, %s25
      %p27 = scmp.eq.s32.totalorder %s26, 0
      %s29 = sadd.s32 %s28, 1
      %s30 = scalar_select %p27, %s28, %s29
      %p33 = pneg %p27
      %p34 = scmp.eq.s32.totalorder %s18, 1
      %p35 = por %p33, %p34
      %p36 = scmp.ne.s32.totalorder %s28, %s31
      %p37 = scmp.eq.s32.totalorder %s18, 0
      %p38 = por %p36, %p37
      %p39 = scmp.ne.s32.totalorder %s28, %s31
      %p40 = scmp.eq.s32.totalorder %s23, 1
      %p41 = por %p39, %p40
      %p42 = scmp.ne.s32.totalorder %s31, %s32
      %p43 = scmp.eq.s32.totalorder %s23, 0
      %p44 = por %p42, %p43
      %p45 = scmp.ne.s32.totalorder %s31, %s32
      %p46 = scmp.eq.s32.totalorder %s24, 1
      %p47 = por %p45, %p46
      %p49 = scmp.ne.s32.totalorder %s32, %s48
      %p50 = scmp.eq.s32.totalorder %s24, 0
      %p51 = por %p49, %p50
      %s53 = sadd.s32 %s52, 1
      %p56 = scmp.eq.s32.totalorder %s18, 1
      %p57 = scmp.ne.s32.totalorder %s52, %s54
      %p58 = scmp.eq.s32.totalorder %s18, 0
      %p59 = por %p57, %p58
      %p60 = scmp.ne.s32.totalorder %s52, %s54
      %p61 = scmp.eq.s32.totalorder %s23, 1
      %p62 = por %p60, %p61
      %p63 = scmp.ne.s32.totalorder %s54, %s55
      %p64 = scmp.eq.s32.totalorder %s23, 0
      %p65 = por %p63, %p64
      %p66 = scmp.ne.s32.totalorder %s54, %s55
      %p67 = scmp.eq.s32.totalorder %s24, 1
      %p68 = por %p66, %p67
      %p70 = scmp.ne.s32.totalorder %s55, %s69
      %p71 = scmp.eq.s32.totalorder %s24, 0
      %p72 = por %p70, %p71
      %s74 = sadd.s32 %s73, 1
      %p77 = scmp.eq.s32.totalorder %s18, 1
      %p78 = scmp.ne.s32.totalorder %s73, %s75
      %p79 = scmp.eq.s32.totalorder %s18, 0
      %p80 = por %p78, %p79
      %p81 = scmp.ne.s32.totalorder %s73, %s75
      %p82 = scmp.eq.s32.totalorder %s23, 1
      %p83 = por %p81, %p82
      %p84 = scmp.ne.s32.totalorder %s75, %s76
      %p85 = scmp.eq.s32.totalorder %s23, 0
      %p86 = por %p84, %p85
      %p87 = scmp.ne.s32.totalorder %s75, %s76
      %p88 = scmp.eq.s32.totalorder %s24, 1
      %p89 = por %p87, %p88
      %p91 = scmp.ne.s32.totalorder %s76, %s90
      %p92 = scmp.eq.s32.totalorder %s24, 0
      %p93 = por %p91, %p92
      %s95 = sadd.s32 %s94, 1
      %p98 = scmp.eq.s32.totalorder %s18, 1
      %p99 = scmp.ne.s32.totalorder %s94, %s96
      %p100 = scmp.eq.s32.totalorder %s18, 0
      %p101 = por %p99, %p100
      %p102 = scmp.ne.s32.totalorder %s94, %s96
      %p103 = scmp.eq.s32.totalorder %s23, 1
      %p104 = por %p102, %p103
      %p105 = scmp.ne.s32.totalorder %s96, %s97
      %p106 = scmp.eq.s32.totalorder %s23, 0
      %p107 = por %p105, %p106
      %p108 = scmp.ne.s32.totalorder %s96, %s97
      %p109 = scmp.eq.s32.totalorder %s24, 1
      %p110 = por %p108, %p109
      %p112 = scmp.ne.s32.totalorder %s97, %s111
      %p113 = scmp.eq.s32.totalorder %s24, 0
      %p114 = por %p112, %p113
      %s116 = sadd.s32 %s115, 1
      %p119 = scmp.eq.s32.totalorder %s18, 1
      %p120 = scmp.ne.s32.totalorder %s115, %s117
      %p121 = scmp.eq.s32.totalorder %s18, 0
      %p122 = por %p120, %p121
      %p123 = scmp.ne.s32.totalorder %s115, %s117
      %p124 = scmp.eq.s32.totalorder %s23, 1
      %p125 = por %p123, %p124
      %p126 = scmp.ne.s32.totalorder %s117, %s118
      %p127 = scmp.eq.s32.totalorder %s23, 0
      %p128 = por %p126, %p127
      %p129 = scmp.ne.s32.totalorder %s117, %s118
      %p130 = scmp.eq.s32.totalorder %s24, 1
      %p131 = por %p129, %p130
      %p133 = scmp.ne.s32.totalorder %s118, %s132
      %p134 = scmp.eq.s32.totalorder %s24, 0
      %p135 = por %p133, %p134
      %s136 = ssub.s32 %s18, %s25
      %p137 = scmp.eq.s32.totalorder %s136, 0
      %s139 = sadd.s32 %s138, 1
      %s140 = scalar_select %p137, %s138, %s139
      %p143 = pneg %p137
      %p144 = scmp.eq.s32.totalorder %s18, 1
      %p145 = por %p143, %p144
      %p146 = scmp.ne.s32.totalorder %s138, %s141
      %p147 = scmp.eq.s32.totalorder %s18, 0
      %p148 = por %p146, %p147
      %p149 = scmp.ne.s32.totalorder %s138, %s141
      %p150 = scmp.eq.s32.totalorder %s23, 1
      %p151 = por %p149, %p150
      %p152 = scmp.ne.s32.totalorder %s141, %s142
      %p153 = scmp.eq.s32.totalorder %s23, 0
      %p154 = por %p152, %p153
      %p155 = scmp.ne.s32.totalorder %s141, %s142
      %p156 = scmp.eq.s32.totalorder %s24, 1
      %p157 = por %p155, %p156
      %p159 = scmp.ne.s32.totalorder %s142, %s158
      %p160 = scmp.eq.s32.totalorder %s24, 0
      %p161 = por %p159, %p160
      %p162 = scmp.le.s32.totalorder 1, %s18
      %p163 = scmp.lt.s32.totalorder %s18, 3
      %p164 = pnand %p162, %p163
      %p165 = pneg %p164
      // Predicated region
      $region9: #{tpu_custom_call.1} parent=5 // pred_check
        _
      $region10: #{tpu_custom_call.1} parent=5 // pred_check_branch
        %167 = sbr.rel (%p164) target = $region12
      $region11: #{tpu_custom_call.1} parent=5 // pred_region
        %s168 = ssub.s32 %s18, 1
        // Predicated region
        $region13: #{tpu_custom_call.1} parent=11 // pred_check
          %p169 = pneg %p65
        $region14: #{tpu_custom_call.1} parent=11 // pred_check_branch
          %171 = sbr.rel (%p169) target = $region16
        $region15: #{tpu_custom_call.1} parent=11 // pred_region
          %s173 = ssub.s32 2048, 2048
          %174 = vsyncadd [#allocation6], %s173
          %s175 = sshll.u32 [#allocation5], 4
          %s176 = int_to_ptr.vmem [resolvable:$true] %s175
          %181 = dma.hbm_to_vmem [thread:$0]  %s1, 2048, %s176, [#allocation6], 128, 128, 8
        $region16: #{tpu_custom_call.1} parent=11 // pred_fallthru
          _
        // Predicated region
        $region17: #{tpu_custom_call.1} parent=11 // pred_check
          %p182 = pneg %p86
        $region18: #{tpu_custom_call.1} parent=11 // pred_check_branch
          %184 = sbr.rel (%p182) target = $region20
        $region19: #{tpu_custom_call.1} parent=11 // pred_region
          _
        $region20: #{tpu_custom_call.1} parent=11 // pred_fallthru
          _
        // Predicated region
        $region21: #{tpu_custom_call.1} parent=11 // pred_check
          %p185 = pneg %p107
        $region22: #{tpu_custom_call.1} parent=11 // pred_check_branch
          %187 = sbr.rel (%p185) target = $region24
        $region23: #{tpu_custom_call.1} parent=11 // pred_region
          %s189 = ssub.s32 2048, 2048
          %190 = vsyncadd [#allocation6], %s189
          %s191 = sshll.u32 [#allocation7], 4
          %s192 = int_to_ptr.vmem [resolvable:$true] %s191
          %197 = dma.hbm_to_vmem [thread:$0]  %s3, 2048, %s192, [#allocation6], 64, 64, 4
        $region24: #{tpu_custom_call.1} parent=11 // pred_fallthru
          _
        // Predicated region
        $region25: #{tpu_custom_call.1} parent=11 // pred_check
          %p198 = pneg %p128
        $region26: #{tpu_custom_call.1} parent=11 // pred_check_branch
          %200 = sbr.rel (%p198) target = $region28
        $region27: #{tpu_custom_call.1} parent=11 // pred_region
          _
        $region28: #{tpu_custom_call.1} parent=11 // pred_fallthru
          _
      $region12: #{tpu_custom_call.1} parent=5 // pred_fallthru
        _
      %p201 = scmp.lt.s32.totalorder %s18, 2
      // Predicated region
      $region29: #{tpu_custom_call.1} parent=5 // pred_check
        %p202 = pneg %p201
      $region30: #{tpu_custom_call.1} parent=5 // pred_check_branch
        %204 = sbr.rel (%p202) target = $region32
      $region31: #{tpu_custom_call.1} parent=5 // pred_region
        // Predicated region
        $region33: #{tpu_custom_call.1} parent=31 // pred_check
          %p205 = pneg %p38
        $region34: #{tpu_custom_call.1} parent=31 // pred_check_branch
          %207 = sbr.rel (%p205) target = $region36
        $region35: #{tpu_custom_call.1} parent=31 // pred_region
          %s208 = sand.u32 %s28, 1
          %s209 = scalar_lea.sflag [#allocation3], %s208
          %s210 = sand.u32 %s28, 1
          %s211 = smul.addr %s210, 8
          %s212 = scalar_lea.vmem [#allocation2], %s211
          %s213 = smul.u32 2, %s18
          %s215 = ssub.s32 128, 128
          %216 = vsyncadd %s209, %s215
          %s217 = smul.addr %s213, 64
          %s218 = scalar_lea.hbm %s0, %s217
          %s219 = sshll.u32 %s212, 4
          %s220 = int_to_ptr.vmem [resolvable:$true] %s219
          %225 = dma.hbm_to_vmem [thread:$0]  %s218, 128, %s220, %s209, 64, 64, 4
        $region36: #{tpu_custom_call.1} parent=31 // pred_fallthru
          _
      $region32: #{tpu_custom_call.1} parent=5 // pred_fallthru
        _
      %p226 = scmp.le.s32.totalorder 1, %s18
      %p227 = scmp.lt.s32.totalorder %s18, 3
      %p228 = pnand %p226, %p227
      %p229 = pneg %p228
      // Predicated region
      $region37: #{tpu_custom_call.1} parent=5 // pred_check
        _
      $region38: #{tpu_custom_call.1} parent=5 // pred_check_branch
        %231 = sbr.rel (%p228) target = $region40
      $region39: #{tpu_custom_call.1} parent=5 // pred_region
        %s232 = ssub.s32 %s18, 1
        %s233 = sand.u32 %s31, 1
        %s234 = scalar_lea.sflag [#allocation3], %s233
        %s235 = sand.u32 %s31, 1
        %s236 = smul.addr %s235, 8
        %s237 = scalar_lea.vmem [#allocation2], %s236
        // Predicated region
        $region41: #{tpu_custom_call.1} parent=39 // pred_check
          %p238 = pneg %p44
        $region42: #{tpu_custom_call.1} parent=39 // pred_check_branch
          %240 = sbr.rel (%p238) target = $region44
        $region43: #{tpu_custom_call.1} parent=39 // pred_region
          %241 = dma.done %s234, 128
        $region44: #{tpu_custom_call.1} parent=39 // pred_fallthru
          _
        // Predicated region
        $region45: #{tpu_custom_call.1} parent=39 // pred_check
          %p242 = pneg %p65
        $region46: #{tpu_custom_call.1} parent=39 // pred_check_branch
          %244 = sbr.rel (%p242) target = $region48
        $region47: #{tpu_custom_call.1} parent=39 // pred_region
          %245 = dma.done [#allocation6], 2048
        $region48: #{tpu_custom_call.1} parent=39 // pred_fallthru
          _
        // Predicated region
        $region49: #{tpu_custom_call.1} parent=39 // pred_check
          %p246 = pneg %p107
        $region50: #{tpu_custom_call.1} parent=39 // pred_check_branch
          %248 = sbr.rel (%p246) target = $region52
        $region51: #{tpu_custom_call.1} parent=39 // pred_region
          %249 = dma.done [#allocation6], 2048
        $region52: #{tpu_custom_call.1} parent=39 // pred_fallthru
          _
        %s250 = sand.u32 %s31, 1
        %s251 = scalar_lea.sflag [#allocation3], %s250
        %s252 = sand.u32 %s31, 1
        %s253 = smul.addr %s252, 8
        %s254 = scalar_lea.vmem [#allocation2], %s253
        %p255 = pneg %p44
        %p256 = pneg %p41
        %p257 = pneg %p65
        %p258 = pneg %p62
        %p259 = pneg %p86
        %p260 = pneg %p83
        %p261 = pneg %p107
        %p262 = pneg %p104
        %p263 = pneg %p128
        %p264 = pneg %p125
        %p265 = pneg %p154
        %p266 = pneg %p151
        %s267 = sand.u32 %s141, 1
        %s268 = scalar_lea.sflag [#allocation4], %s267
        %s269 = sand.u32 %s141, 1
        %s270 = smul.addr %s269, 16
        %s271 = scalar_lea.vmem [#allocation8], %s270
        %s272 = smul.u32 2, %s23
        %s273 = smul.u32 2, %s23
        %v275 = vld [vmem:[%s237] sm:$0xf]
        %v276 = vld [vmem:[%s237 + $0x4] sm:$0xf]
        %v277 = vld [vmem:[#allocation5] sm:$0xff]
        %v278 = vld [vmem:[#allocation5 + $0x8] sm:$0xff]
        %v279 = vld [vmem:[#allocation5 + $0x10] sm:$0xff]
        %v280 = vld [vmem:[#allocation5 + $0x18] sm:$0xff]
        %v281 = vld [vmem:[#allocation5 + $0x20] sm:$0xff]
        %v282 = vld [vmem:[#allocation5 + $0x28] sm:$0xff]
        %v283 = vld [vmem:[#allocation5 + $0x30] sm:$0xff]
        %v284 = vld [vmem:[#allocation5 + $0x38] sm:$0xff]
        %v285 = vld [vmem:[#allocation5 + $0x40] sm:$0xff]
        %v286 = vld [vmem:[#allocation5 + $0x48] sm:$0xff]
        %v287 = vld [vmem:[#allocation5 + $0x50] sm:$0xff]
        %v288 = vld [vmem:[#allocation5 + $0x58] sm:$0xff]
        %v289 = vld [vmem:[#allocation5 + $0x60] sm:$0xff]
        %v290 = vld [vmem:[#allocation5 + $0x68] sm:$0xff]
        %v291 = vld [vmem:[#allocation5 + $0x70] sm:$0xff]
        %v292 = vld [vmem:[#allocation5 + $0x78] sm:$0xff]
        %v293 = vld [vmem:[%s2] sm:$0x3]
        %v295 = vlaneseq
        %v296 = vshrl.u32 %v295, 7
        %v297 = vsub.s32 0, %v296
        %v298 = vrot.slane %v293, %v297
        %v299 = vlaneseq
        %v300 = vshrl.u32 %v299, 7
        %v301 = vsub.s32 1, %v300
        %v302 = vrot.slane %v293, %v301
        %v307 = vunpack.c.l.b16 %v275
        %v308 = vunpack.c.l.b16 %v276
        %v309 = vpack.c.b16 %v308, %v307
        %v327 = vunpack.c.l.b16 %v277
        %v328 = vunpack.c.h.b16 %v277
        %v329 = vunpack.c.l.b16 %v278
        %v330 = vunpack.c.h.b16 %v278
        %v331 = vunpack.c.l.b16 %v279
        %v332 = vunpack.c.h.b16 %v279
        %v333 = vunpack.c.l.b16 %v280
        %v334 = vunpack.c.h.b16 %v280
        %v335 = vunpack.c.l.b16 %v281
        %v336 = vunpack.c.h.b16 %v281
        %v337 = vunpack.c.l.b16 %v282
        %v338 = vunpack.c.h.b16 %v282
        %v339 = vunpack.c.l.b16 %v283
        %v340 = vunpack.c.h.b16 %v283
        %v341 = vunpack.c.l.b16 %v284
        %v342 = vunpack.c.h.b16 %v284
        %v343 = vunpack.c.l.b16 %v285
        %v344 = vunpack.c.h.b16 %v285
        %v345 = vunpack.c.l.b16 %v286
        %v346 = vunpack.c.h.b16 %v286
        %v347 = vunpack.c.l.b16 %v287
        %v348 = vunpack.c.h.b16 %v287
        %v349 = vunpack.c.l.b16 %v288
        %v350 = vunpack.c.h.b16 %v288
        %v351 = vunpack.c.l.b16 %v289
        %v352 = vunpack.c.h.b16 %v289
        %v353 = vunpack.c.l.b16 %v290
        %v354 = vunpack.c.h.b16 %v290
        %v355 = vunpack.c.l.b16 %v291
        %v356 = vunpack.c.h.b16 %v291
        %v357 = vunpack.c.l.b16 %v292
        %v358 = vunpack.c.h.b16 %v292
        %v359 = vpack.c.b16 %v329, %v327
        %v360 = vpack.c.b16 %v330, %v328
        %v361 = vpack.c.b16 %v333, %v331
        %v362 = vpack.c.b16 %v334, %v332
        %v363 = vpack.c.b16 %v337, %v335
        %v364 = vpack.c.b16 %v338, %v336
        %v365 = vpack.c.b16 %v341, %v339
        %v366 = vpack.c.b16 %v342, %v340
        %v367 = vpack.c.b16 %v345, %v343
        %v368 = vpack.c.b16 %v346, %v344
        %v369 = vpack.c.b16 %v349, %v347
        %v370 = vpack.c.b16 %v350, %v348
        %v371 = vpack.c.b16 %v353, %v351
        %v372 = vpack.c.b16 %v354, %v352
        %v373 = vpack.c.b16 %v357, %v355
        %v374 = vpack.c.b16 %v358, %v356
        %391 = vmatprep.subr.bf16.mxu0 %v360
        %392 = vmatpush1.bf16.msra.mxu0 %v359
        %393 = vmatprep.subr.bf16.mxu0 %v362
        %394 = vmatpush1.bf16.msra.mxu0 %v361
        %395 = vmatprep.subr.bf16.mxu0 %v364
        %396 = vmatpush1.bf16.msra.mxu0 %v363
        %397 = vmatprep.subr.bf16.mxu0 %v366
        %398 = vmatpush1.bf16.msra.mxu0 %v365
        %399 = vmatprep.subr.bf16.mxu0 %v368
        %400 = vmatpush1.bf16.msra.mxu0 %v367
        %401 = vmatprep.subr.bf16.mxu0 %v370
        %402 = vmatpush1.bf16.msra.mxu0 %v369
        %403 = vmatprep.subr.bf16.mxu0 %v372
        %404 = vmatpush1.bf16.msra.mxu0 %v371
        %405 = vmatprep.subr.bf16.mxu0 %v374
        %406 = vmatpush1.bf16.msra.mxu0 %v373
        %407 = vmatprep.subr.bf16.mxu0 0
        %408 = vmatpush1.bf16.msra.mxu0 0
        %409 = vmatprep.subr.bf16.mxu0 0
        %410 = vmatpush1.bf16.msra.mxu0 0
        %411 = vmatprep.subr.bf16.mxu0 0
        %412 = vmatpush1.bf16.msra.mxu0 0
        %413 = vmatprep.subr.bf16.mxu0 0
        %414 = vmatpush1.bf16.msra.mxu0 0
        %415 = vmatprep.subr.bf16.mxu0 0
        %416 = vmatpush1.bf16.msra.mxu0 0
        %417 = vmatprep.subr.bf16.mxu0 0
        %418 = vmatpush1.bf16.msra.mxu0 0
        %419 = vmatprep.subr.bf16.mxu0 0
        %420 = vmatpush1.bf16.msra.mxu0 0
        %421 = vmatprep.subr.bf16.mxu0 0
        %422 = vmatpush1.bf16.msra.mxu0 0
        %423 = vmatprep.mubr.bf16.mxu0 0
        %424 = vmatmul.mubr.bf16.gmra.mrb[0].mxu0 %v309
        %v425 = vpop.f32.mrb[0].mxu0
        %v426 = vadd.f32 %v298, %v425
        %v427 = vpop.f32.mrb[0].mxu0
        %v428 = vadd.f32 %v302, %v427
        %v429 = vpop.f32.mrb[0].mxu0
        %v430 = vadd.f32 %v298, %v429
        %v431 = vpop.f32.mrb[0].mxu0
        %v432 = vadd.f32 %v302, %v431
        %433 = vdwg.mxu0
        %v434 = vmax.f32 %v426, 0.0
        %v435 = vmax.f32 %v428, 0.0
        %v436 = vmax.f32 %v430, 0.0
        %v437 = vmax.f32 %v432, 0.0
        %v438 = vpack.c.bf16 %v436, %v434
        %v439 = vpack.c.bf16 %v437, %v435
        %v440 = vld [vmem:[#allocation7] sm:$0xf]
        %v441 = vld [vmem:[#allocation7 + $0x4] sm:$0xf]
        %v442 = vld [vmem:[#allocation7 + $0x8] sm:$0xf]
        %v443 = vld [vmem:[#allocation7 + $0xc] sm:$0xf]
        %v444 = vld [vmem:[#allocation7 + $0x10] sm:$0xf]
        %v445 = vld [vmem:[#allocation7 + $0x14] sm:$0xf]
        %v446 = vld [vmem:[#allocation7 + $0x18] sm:$0xf]
        %v447 = vld [vmem:[#allocation7 + $0x1c] sm:$0xf]
        %v448 = vld [vmem:[#allocation7 + $0x20] sm:$0xf]
        %v449 = vld [vmem:[#allocation7 + $0x24] sm:$0xf]
        %v450 = vld [vmem:[#allocation7 + $0x28] sm:$0xf]
        %v451 = vld [vmem:[#allocation7 + $0x2c] sm:$0xf]
        %v452 = vld [vmem:[#allocation7 + $0x30] sm:$0xf]
        %v453 = vld [vmem:[#allocation7 + $0x34] sm:$0xf]
        %v454 = vld [vmem:[#allocation7 + $0x38] sm:$0xf]
        %v455 = vld [vmem:[#allocation7 + $0x3c] sm:$0xf]
        %v456 = vld [vmem:[#allocation7 + $0x40] sm:$0xf]
        %v457 = vld [vmem:[#allocation7 + $0x44] sm:$0xf]
        %v458 = vld [vmem:[#allocation7 + $0x48] sm:$0xf]
        %v459 = vld [vmem:[#allocation7 + $0x4c] sm:$0xf]
        %v460 = vld [vmem:[#allocation7 + $0x50] sm:$0xf]
        %v461 = vld [vmem:[#allocation7 + $0x54] sm:$0xf]
        %v462 = vld [vmem:[#allocation7 + $0x58] sm:$0xf]
        %v463 = vld [vmem:[#allocation7 + $0x5c] sm:$0xf]
        %v464 = vld [vmem:[#allocation7 + $0x60] sm:$0xf]
        %v465 = vld [vmem:[#allocation7 + $0x64] sm:$0xf]
        %v466 = vld [vmem:[#allocation7 + $0x68] sm:$0xf]
        %v467 = vld [vmem:[#allocation7 + $0x6c] sm:$0xf]
        %v468 = vld [vmem:[#allocation7 + $0x70] sm:$0xf]
        %v469 = vld [vmem:[#allocation7 + $0x74] sm:$0xf]
        %v470 = vld [vmem:[#allocation7 + $0x78] sm:$0xf]
        %v471 = vld [vmem:[#allocation7 + $0x7c] sm:$0xf]
        %v472 = vld [vmem:[%s4] sm:$0x1]
        %v474 = vlaneseq
        %v475 = vshrl.u32 %v474, 7
        %v476 = vsub.s32 0, %v475
        %v477 = vrot.slane %v472, %v476
        %v511 = vunpack.c.l.b16 %v440
        %v512 = vunpack.c.l.b16 %v441
        %v513 = vunpack.c.l.b16 %v442
        %v514 = vunpack.c.l.b16 %v443
        %v515 = vunpack.c.l.b16 %v444
        %v516 = vunpack.c.l.b16 %v445
        %v517 = vunpack.c.l.b16 %v446
        %v518 = vunpack.c.l.b16 %v447
        %v519 = vunpack.c.l.b16 %v448
        %v520 = vunpack.c.l.b16 %v449
        %v521 = vunpack.c.l.b16 %v450
        %v522 = vunpack.c.l.b16 %v451
        %v523 = vunpack.c.l.b16 %v452
        %v524 = vunpack.c.l.b16 %v453
        %v525 = vunpack.c.l.b16 %v454
        %v526 = vunpack.c.l.b16 %v455
        %v527 = vunpack.c.l.b16 %v456
        %v528 = vunpack.c.l.b16 %v457
        %v529 = vunpack.c.l.b16 %v458
        %v530 = vunpack.c.l.b16 %v459
        %v531 = vunpack.c.l.b16 %v460
        %v532 = vunpack.c.l.b16 %v461
        %v533 = vunpack.c.l.b16 %v462
        %v534 = vunpack.c.l.b16 %v463
        %v535 = vunpack.c.l.b16 %v464
        %v536 = vunpack.c.l.b16 %v465
        %v537 = vunpack.c.l.b16 %v466
        %v538 = vunpack.c.l.b16 %v467
        %v539 = vunpack.c.l.b16 %v468
        %v540 = vunpack.c.l.b16 %v469
        %v541 = vunpack.c.l.b16 %v470
        %v542 = vunpack.c.l.b16 %v471
        %v543 = vpack.c.b16 %v512, %v511
        %v544 = vpack.c.b16 %v514, %v513
        %v545 = vpack.c.b16 %v516, %v515
        %v546 = vpack.c.b16 %v518, %v517
        %v547 = vpack.c.b16 %v520, %v519
        %v548 = vpack.c.b16 %v522, %v521
        %v549 = vpack.c.b16 %v524, %v523
        %v550 = vpack.c.b16 %v526, %v525
        %v551 = vpack.c.b16 %v528, %v527
        %v552 = vpack.c.b16 %v530, %v529
        %v553 = vpack.c.b16 %v532, %v531
        %v554 = vpack.c.b16 %v534, %v533
        %v555 = vpack.c.b16 %v536, %v535
        %v556 = vpack.c.b16 %v538, %v537
        %v557 = vpack.c.b16 %v540, %v539
        %v558 = vpack.c.b16 %v542, %v541
        %575 = vmatprep.subr.bf16.mxu0 0
        %576 = vmatpush1.bf16.msra.mxu0 %v543
        %577 = vmatprep.subr.bf16.mxu0 0
        %578 = vmatpush1.bf16.msra.mxu0 %v544
        %579 = vmatprep.subr.bf16.mxu0 0
        %580 = vmatpush1.bf16.msra.mxu0 %v545
        %581 = vmatprep.subr.bf16.mxu0 0
        %582 = vmatpush1.bf16.msra.mxu0 %v546
        %583 = vmatprep.subr.bf16.mxu0 0
        %584 = vmatpush1.bf16.msra.mxu0 %v547
        %585 = vmatprep.subr.bf16.mxu0 0
        %586 = vmatpush1.bf16.msra.mxu0 %v548
        %587 = vmatprep.subr.bf16.mxu0 0
        %588 = vmatpush1.bf16.msra.mxu0 %v549
        %589 = vmatprep.subr.bf16.mxu0 0
        %590 = vmatpush1.bf16.msra.mxu0 %v550
        %591 = vmatprep.subr.bf16.mxu0 0
        %592 = vmatpush1.bf16.msra.mxu0 %v551
        %593 = vmatprep.subr.bf16.mxu0 0
        %594 = vmatpush1.bf16.msra.mxu0 %v552
        %595 = vmatprep.subr.bf16.mxu0 0
        %596 = vmatpush1.bf16.msra.mxu0 %v553
        %597 = vmatprep.subr.bf16.mxu0 0
        %598 = vmatpush1.bf16.msra.mxu0 %v554
        %599 = vmatprep.subr.bf16.mxu0 0
        %600 = vmatpush1.bf16.msra.mxu0 %v555
        %601 = vmatprep.subr.bf16.mxu0 0
        %602 = vmatpush1.bf16.msra.mxu0 %v556
        %603 = vmatprep.subr.bf16.mxu0 0
        %604 = vmatpush1.bf16.msra.mxu0 %v557
        %605 = vmatprep.subr.bf16.mxu0 0
        %606 = vmatpush1.bf16.msra.mxu0 %v558
        %607 = vmatprep.mubr.bf16.mxu0 %v439
        %608 = vmatmul.mubr.bf16.gmra.mrb[0].mxu0 %v438
        %v609 = vpop.f32.mrb[0].mxu0
        %v610 = vadd.f32 %v477, %v609
        %v611 = vpop.f32.mrb[0].mxu0
        %v612 = vpop.f32.mrb[0].mxu0
        %v613 = vadd.f32 %v477, %v612
        %v614 = vpop.f32.mrb[0].mxu0
        %615 = vdwg.mxu0
        %616 = vst [vmem:[%s271] sm:$0xff] %v610
        %617 = vst [vmem:[%s271 + $0x8] sm:$0xff] %v613
        %s618 = sand.u32 %s141, 1
        %s619 = scalar_lea.sflag [#allocation4], %s618
        %s620 = sand.u32 %s141, 1
        %s621 = smul.addr %s620, 16
        %s622 = scalar_lea.vmem [#allocation8], %s621
        // Predicated region
        $region53: #{tpu_custom_call.1} parent=39 // pred_check
          %p623 = pneg %p151
        $region54: #{tpu_custom_call.1} parent=39 // pred_check_branch
          %625 = sbr.rel (%p623) target = $region56
        $region55: #{tpu_custom_call.1} parent=39 // pred_region
          %s626 = smul.u32 2, %s23
          %s628 = ssub.s32 256, 256
          %629 = vsyncadd %s619, %s628
          %s630 = smul.addr %s626, 128
          %s631 = scalar_lea.hbm %s5, %s630
          %s632 = sshll.u32 %s622, 4
          %s633 = int_to_ptr.vmem [resolvable:$true] %s632
          %638 = dma.vmem_to_hbm [thread:$0]  %s633, 256, %s631, %s619, 128, 128, 8
        $region56: #{tpu_custom_call.1} parent=39 // pred_fallthru
          _
      $region40: #{tpu_custom_call.1} parent=5 // pred_fallthru
        _
      %p639 = scmp.le.s32.totalorder 2, %s18
      // Predicated region
      $region57: #{tpu_custom_call.1} parent=5 // pred_check
        %p640 = pneg %p639
      $region58: #{tpu_custom_call.1} parent=5 // pred_check_branch
        %642 = sbr.rel (%p640) target = $region60
      $region59: #{tpu_custom_call.1} parent=5 // pred_region
        %s643 = ssub.s32 %s18, 2
        // Predicated region
        $region61: #{tpu_custom_call.1} parent=59 // pred_check
          %p644 = pneg %p157
        $region62: #{tpu_custom_call.1} parent=59 // pred_check_branch
          %646 = sbr.rel (%p644) target = $region64
        $region63: #{tpu_custom_call.1} parent=59 // pred_region
          %s647 = sand.u32 %s142, 1
          %s648 = scalar_lea.sflag [#allocation4], %s647
          %s649 = sand.u32 %s142, 1
          %s650 = smul.addr %s649, 16
          %s651 = scalar_lea.vmem [#allocation8], %s650
          %652 = dma.done %s648, 256
        $region64: #{tpu_custom_call.1} parent=59 // pred_fallthru
          _
      $region60: #{tpu_custom_call.1} parent=5 // pred_fallthru
        _
    $region6: #{tpu_custom_call.1} parent=1 // loop_footer
      %s22 = sadd.s32 1, %s18
    $region7: #{tpu_custom_call.1} parent=1 // loop_footer_branch
      %17 = sbr.rel target = $region3
    $region8: #{tpu_custom_call.1} parent=1 // loop_exit
      _
    %653 = vsyncpa [#allocation3], 1
    %s654 = scalar_lea.sflag [#allocation3], 1
    %655 = vsyncpa %s654, 1
    %656 = vsyncpa [#allocation6], 1
    %657 = vsyncpa [#allocation4], 1
    %s658 = scalar_lea.sflag [#allocation4], 1
    %659 = vsyncpa %s658, 1

</llo_original>
